<compile_context>
chip_gen: v7x
topology: tpu7x:2x2x1
jax: 0.10.0
libtpu: 0.0.40
codegen_flags: <defaults>
</compile_context>

<pallas_src>
import jax
import jax.numpy as jnp
from jax.experimental import pallas as pl
from jax.experimental.pallas import tpu as pltpu

LEAKY_SLOPE = 0.1


def _leaky_relu(x):
    return jnp.where(x > 0, x, LEAKY_SLOPE * x)


def _round_up(n, m):
    return ((n + m - 1) // m) * m


def mapper_nn_kernel(x_ref, w0_ref, b0_ref, w1_ref, b1_ref, w2_ref, b2_ref,
                     o_ref):
    """One batch tile of the fused 3-layer MLP + LeakyReLU + row softmax.

    x_ref:           (TILE_B, in)   bf16   (batch-gridded)
    w{i}_ref:        (in_i, out_i)  bf16   (resident across grid steps)
    b{i}_ref:        (1, out_i)     f32    (resident across grid steps)
    o_ref:           (TILE_B, out)  f32
    Matmuls hit the MXU with f32 accumulation; elementwise / softmax on
    VPU + EUP in f32.
    """
    x = x_ref[...]

    # fc_layers[0]
    h = jnp.dot(x, w0_ref[...], preferred_element_type=jnp.float32) + b0_ref[...]

    # leaky_relu -> dropout(p=0.0, eval => identity) -> fc_layers[1]
    # TODO(synk): dropout_prob=0.0 (eval semantics) -> identity; no RNG mask emitted.
    h = _leaky_relu(h)
    h = jnp.dot(h.astype(w1_ref.dtype), w1_ref[...],
                preferred_element_type=jnp.float32) + b1_ref[...]

    # leaky_relu -> dropout(identity) -> fc_layers[2]
    h = _leaky_relu(h)
    h = jnp.dot(h.astype(w2_ref.dtype), w2_ref[...],
                preferred_element_type=jnp.float32) + b2_ref[...]

    # softmax over dim=1 (feature axis), numerically stable, f32 throughout.
    m = jnp.max(h, axis=1, keepdims=True)
    e = jnp.exp(h - m)                      # EUP
    denom = jnp.sum(e, axis=1, keepdims=True)
    # reciprocal lands on the EUP slot instead of a VALU divide.
    o_ref[...] = e * pl.reciprocal(denom, approx=False)
    # Note: output last dim (16) < 128 lanes => masked stores; lane-dense
    # padding only worth it if the store tail shows up in a profile.


def mapper_nn_forward(x, params, *, tile_b=512):
    """params: dict with PyTorch-layout weights W{i}: (out, in), b{i}: (out,)."""
    B, in_size = x.shape
    h0 = params["W0"].shape[0]
    h1 = params["W1"].shape[0]
    out_size = params["W2"].shape[0]

    # --- glue: bf16 activations/weights, f32 biases, (in, out) weight layout ---
    w0t = params["W0"].T.astype(jnp.bfloat16)
    w1t = params["W1"].T.astype(jnp.bfloat16)
    w2t = params["W2"].T.astype(jnp.bfloat16)
    b0 = params["b0"].reshape(1, -1).astype(jnp.float32)
    b1 = params["b1"].reshape(1, -1).astype(jnp.float32)
    b2 = params["b2"].reshape(1, -1).astype(jnp.float32)

    # --- batch tiling: tile_b rows per grid step, pad B up to a multiple ---
    tile_b = min(tile_b, _round_up(B, 8))          # small batches: one tile
    padded_b = _round_up(B, tile_b)
    x_in = x.astype(jnp.bfloat16)
    if padded_b != B:
        x_in = jnp.pad(x_in, ((0, padded_b - B), (0, 0)))
    grid = (padded_b // tile_b,)

    flops = 2 * padded_b * (in_size * h0 + h0 * h1 + h1 * out_size)
    bytes_accessed = (
        padded_b * in_size * 2                     # x (bf16)
        + (in_size * h0 + h0 * h1 + h1 * out_size) * 2  # weights (bf16)
        + (h0 + h1 + out_size) * 4                 # biases (f32)
        + padded_b * out_size * 4                  # output (f32)
    )

    grid_spec = pltpu.PrefetchScalarGridSpec(
        num_scalar_prefetch=0,
        grid=grid,
        in_specs=[
            pl.BlockSpec((tile_b, in_size), lambda i: (i, 0)),   # x: batch-tiled
            pl.BlockSpec((in_size, h0),     lambda i: (0, 0)),   # W0 resident
            pl.BlockSpec((1, h0),           lambda i: (0, 0)),   # b0 resident
            pl.BlockSpec((h0, h1),          lambda i: (0, 0)),   # W1 resident
            pl.BlockSpec((1, h1),           lambda i: (0, 0)),   # b1 resident
            pl.BlockSpec((h1, out_size),    lambda i: (0, 0)),   # W2 resident
            pl.BlockSpec((1, out_size),     lambda i: (0, 0)),   # b2 resident
        ],
        out_specs=pl.BlockSpec((tile_b, out_size), lambda i: (i, 0)),
    )

    out = pl.pallas_call(
        mapper_nn_kernel,
        out_shape=jax.ShapeDtypeStruct((padded_b, out_size), jnp.float32),
        grid_spec=grid_spec,
        compiler_params=pltpu.CompilerParams(
            dimension_semantics=("parallel",)),
        cost_estimate=pl.CostEstimate(
            flops=flops,
            transcendentals=padded_b * out_size,
            bytes_accessed=bytes_accessed),
    )(x_in, w0t, b0, w1t, b1, w2t, b2)

    return out[:B]


def init_params(key, input_size, hidden_sizes, output_size):
    """Deterministic init mimicking nn.Linear's U(-1/sqrt(fan_in), 1/sqrt(fan_in))."""
    dims = []
    if len(hidden_sizes) > 0:
        dims.append((input_size, hidden_sizes[0]))
        for hs in hidden_sizes[1:]:
            dims.append((hidden_sizes[0], hs))
        dims.append((hidden_sizes[-1], output_size))
    else:
        dims.append((input_size, output_size))

    params = {}
    for i, (fan_in, fan_out) in enumerate(dims):
        key, kw, kb = jax.random.split(key, 3)
        bound = 1.0 / (fan_in ** 0.5)
        params[f"W{i}"] = jax.random.uniform(
            kw, (fan_out, fan_in), jnp.float32, -bound, bound)
        params[f"b{i}"] = jax.random.uniform(
            kb, (fan_out,), jnp.float32, -bound, bound)
    return params


def reference_forward(x, params, *, quantize_bf16=True):
    """Pure-JAX reference mirroring the PyTorch forward (no BN, eval dropout).

    With quantize_bf16=True the inputs/weights go through the same bf16 cast
    the kernel uses (accumulation stays f32), so the comparison is
    apples-to-apples.
    """
    def q(a):
        return a.astype(jnp.bfloat16) if quantize_bf16 else a

    h = jnp.dot(q(x), q(params["W0"]).T,
                preferred_element_type=jnp.float32) + params["b0"]
    h = _leaky_relu(h)
    h = jnp.dot(q(h), q(params["W1"]).T,
                preferred_element_type=jnp.float32) + params["b1"]
    h = _leaky_relu(h)
    h = jnp.dot(q(h), q(params["W2"]).T,
                preferred_element_type=jnp.float32) + params["b2"]
    return jax.nn.softmax(h, axis=1)


if __name__ == "__main__":
    INPUT_SIZE = 32
    HIDDEN = [64, 48]
    OUTPUT_SIZE = 16
    BATCH = 8

    key = jax.random.PRNGKey(0)
    key, kx = jax.random.split(key)
    x = jax.random.normal(kx, (BATCH, INPUT_SIZE), jnp.float32)

    params = init_params(key, INPUT_SIZE, HIDDEN, OUTPUT_SIZE)

    # Single-tile path (small batch).
    out = mapper_nn_forward(x, params)
    out = jax.block_until_ready(out)

    ref = reference_forward(x, params, quantize_bf16=True)
    assert out.shape == (BATCH, OUTPUT_SIZE)
    assert jnp.allclose(out, ref, atol=1e-4, rtol=1e-4), "mismatch vs bf16 reference"
    assert jnp.allclose(jnp.sum(out, axis=1), jnp.ones((BATCH,)), atol=1e-5)
    # Softmax output should also be close to the pure-f32 reference.
    ref_f32 = reference_forward(x, params, quantize_bf16=False)
    assert jnp.allclose(out, ref_f32, atol=2e-2), "mismatch vs f32 reference"

    # Multi-step grid path (small tile forces >1 grid step, exercises
    # resident-weight BlockSpecs and batch padding).
    BATCH2 = 40  # pads to 48 with tile_b=16
    key, kx2 = jax.random.split(key)
    x2 = jax.random.normal(kx2, (BATCH2, INPUT_SIZE), jnp.float32)
    out2 = jax.block_until_ready(mapper_nn_forward(x2, params, tile_b=16))
    ref2 = reference_forward(x2, params, quantize_bf16=True)
    assert out2.shape == (BATCH2, OUTPUT_SIZE)
    assert jnp.allclose(out2, ref2, atol=1e-4, rtol=1e-4), "grid-path mismatch"
    assert jnp.allclose(jnp.sum(out2, axis=1), jnp.ones((BATCH2,)), atol=1e-5)

    print("KERNEL_OK")
</pallas_src>

<mosaic_0001>
module attributes {stable_mosaic.version = 11 : i64} {
  func.func @mapper_nn_kernel(%arg0: i32, %arg1: memref<8x32xbf16, #tpu.memory_space<vmem>>, %arg2: memref<32x64xbf16, #tpu.memory_space<vmem>>, %arg3: memref<1x64xf32, #tpu.memory_space<vmem>>, %arg4: memref<64x48xbf16, #tpu.memory_space<vmem>>, %arg5: memref<1x48xf32, #tpu.memory_space<vmem>>, %arg6: memref<48x16xbf16, #tpu.memory_space<vmem>>, %arg7: memref<1x16xf32, #tpu.memory_space<vmem>>, %arg8: memref<8x16xf32, #tpu.memory_space<vmem>>) attributes {dimension_semantics = [#tpu.dimension_semantics<parallel>], iteration_bounds = array<i64: 1>, scalar_prefetch = 0 : i64, scratch_operands = 0 : i64, tpu.core_type = #tpu.core_type<tc>, window_params = [{transform_indices = @transform_0, window_bounds = array<i64: 8, 32>}, {pipeline_mode = #tpu.pipeline_mode<synchronous>, transform_indices = @transform_1, window_bounds = array<i64: 32, 64>}, {pipeline_mode = #tpu.pipeline_mode<synchronous>, transform_indices = @transform_2, window_bounds = array<i64: 1, 64>}, {pipeline_mode = #tpu.pipeline_mode<synchronous>, transform_indices = @transform_3, window_bounds = array<i64: 64, 48>}, {pipeline_mode = #tpu.pipeline_mode<synchronous>, transform_indices = @transform_4, window_bounds = array<i64: 1, 48>}, {pipeline_mode = #tpu.pipeline_mode<synchronous>, transform_indices = @transform_5, window_bounds = array<i64: 48, 16>}, {pipeline_mode = #tpu.pipeline_mode<synchronous>, transform_indices = @transform_6, window_bounds = array<i64: 1, 16>}, {transform_indices = @transform_7, window_bounds = array<i64: 8, 16>}]} {
    %c0 = arith.constant 0 : index
    %c0_0 = arith.constant 0 : index
    %0 = vector.load %arg1[%c0, %c0_0] : memref<8x32xbf16, #tpu.memory_space<vmem>>, vector<8x32xbf16>
    %c0_1 = arith.constant 0 : index
    %c0_2 = arith.constant 0 : index
    %1 = vector.load %arg2[%c0_1, %c0_2] : memref<32x64xbf16, #tpu.memory_space<vmem>>, vector<32x64xbf16>
    %cst = arith.constant dense<0.000000e+00> : vector<8x64xf32>
    %2 = tpu.matmul %0, %1, %cst {dimension_numbers = #tpu.dot_dimension_numbers<[1], [0], [0], [1], [0, 0, 1, 1], [], []>} : vector<8x32xbf16>, vector<32x64xbf16>, vector<8x64xf32> -> vector<8x64xf32>
    %c0_3 = arith.constant 0 : index
    %c0_4 = arith.constant 0 : index
    %3 = vector.load %arg3[%c0_3, %c0_4] : memref<1x64xf32, #tpu.memory_space<vmem>>, vector<1x64xf32>
    %4 = vector.broadcast %3 : vector<1x64xf32> to vector<8x64xf32>
    %5 = arith.addf %2, %4 : vector<8x64xf32>
    %cst_5 = arith.constant 0.000000e+00 : f32
    %6 = vector.broadcast %cst_5 : f32 to vector<8x64xf32>
    %7 = arith.cmpf ogt, %5, %6 : vector<8x64xf32>
    %cst_6 = arith.constant 1.000000e-01 : f32
    %8 = vector.broadcast %cst_6 : f32 to vector<8x64xf32>
    %9 = arith.mulf %8, %5 : vector<8x64xf32>
    %10 = arith.select %7, %5, %9 : vector<8x64xi1>, vector<8x64xf32>
    %11 = arith.truncf %10 : vector<8x64xf32> to vector<8x64xbf16>
    %c0_7 = arith.constant 0 : index
    %c0_8 = arith.constant 0 : index
    %12 = vector.load %arg4[%c0_7, %c0_8] : memref<64x48xbf16, #tpu.memory_space<vmem>>, vector<64x48xbf16>
    %cst_9 = arith.constant dense<0.000000e+00> : vector<8x48xf32>
    %13 = tpu.matmul %11, %12, %cst_9 {dimension_numbers = #tpu.dot_dimension_numbers<[1], [0], [0], [1], [0, 0, 1, 1], [], []>} : vector<8x64xbf16>, vector<64x48xbf16>, vector<8x48xf32> -> vector<8x48xf32>
    %c0_10 = arith.constant 0 : index
    %c0_11 = arith.constant 0 : index
    %14 = vector.load %arg5[%c0_10, %c0_11] : memref<1x48xf32, #tpu.memory_space<vmem>>, vector<1x48xf32>
    %15 = vector.broadcast %14 : vector<1x48xf32> to vector<8x48xf32>
    %16 = arith.addf %13, %15 : vector<8x48xf32>
    %cst_12 = arith.constant 0.000000e+00 : f32
    %17 = vector.broadcast %cst_12 : f32 to vector<8x48xf32>
    %18 = arith.cmpf ogt, %16, %17 : vector<8x48xf32>
    %cst_13 = arith.constant 1.000000e-01 : f32
    %19 = vector.broadcast %cst_13 : f32 to vector<8x48xf32>
    %20 = arith.mulf %19, %16 : vector<8x48xf32>
    %21 = arith.select %18, %16, %20 : vector<8x48xi1>, vector<8x48xf32>
    %22 = arith.truncf %21 : vector<8x48xf32> to vector<8x48xbf16>
    %c0_14 = arith.constant 0 : index
    %c0_15 = arith.constant 0 : index
    %23 = vector.load %arg6[%c0_14, %c0_15] : memref<48x16xbf16, #tpu.memory_space<vmem>>, vector<48x16xbf16>
    %cst_16 = arith.constant dense<0.000000e+00> : vector<8x16xf32>
    %24 = tpu.matmul %22, %23, %cst_16 {dimension_numbers = #tpu.dot_dimension_numbers<[1], [0], [0], [1], [0, 0, 1, 1], [], []>} : vector<8x48xbf16>, vector<48x16xbf16>, vector<8x16xf32> -> vector<8x16xf32>
    %c0_17 = arith.constant 0 : index
    %c0_18 = arith.constant 0 : index
    %25 = vector.load %arg7[%c0_17, %c0_18] : memref<1x16xf32, #tpu.memory_space<vmem>>, vector<1x16xf32>
    %26 = vector.broadcast %25 : vector<1x16xf32> to vector<8x16xf32>
    %27 = arith.addf %24, %26 : vector<8x16xf32>
    %cst_19 = arith.constant dense<0xFF800000> : vector<8xf32>
    %28 = vector.multi_reduction <maximumf>, %27, %cst_19 [1] : vector<8x16xf32> to vector<8xf32>
    %29 = vector.shape_cast %28 : vector<8xf32> to vector<8x1xf32>
    %30 = vector.broadcast %29 : vector<8x1xf32> to vector<8x16xf32>
    %31 = arith.subf %27, %30 : vector<8x16xf32>
    %32 = math.exp %31 : vector<8x16xf32>
    %cst_20 = arith.constant dense<0.000000e+00> : vector<8xf32>
    %33 = vector.multi_reduction <add>, %32, %cst_20 [1] : vector<8x16xf32> to vector<8xf32>
    %34 = vector.shape_cast %33 : vector<8xf32> to vector<8x1xf32>
    %35 = tpu.reciprocal %34 : vector<8x1xf32> -> vector<8x1xf32>
    %36 = vector.broadcast %35 : vector<8x1xf32> to vector<8x16xf32>
    %37 = arith.mulf %32, %36 : vector<8x16xf32>
    %c0_21 = arith.constant 0 : index
    %c0_22 = arith.constant 0 : index
    %38 = vector.load %arg8[%c0_21, %c0_22] : memref<8x16xf32, #tpu.memory_space<vmem>>, vector<8x16xf32>
    tpu.vector_store %arg8[%c0_21, %c0_22], %37 {strides = array<i32>} : memref<8x16xf32, #tpu.memory_space<vmem>>, vector<8x16xf32>,
    return
  }
  func.func @transform_0(%arg0: i32) -> (i32, i32) {
    %c0_i32 = arith.constant 0 : i32
    %c0_i32_0 = arith.constant 0 : i32
    return %arg0, %c0_i32 : i32, i32
  }
  func.func @transform_1(%arg0: i32) -> (i32, i32) {
    %c0_i32 = arith.constant 0 : i32
    %c0_i32_0 = arith.constant 0 : i32
    %c0_i32_1 = arith.constant 0 : i32
    return %c0_i32, %c0_i32_0 : i32, i32
  }
  func.func @transform_2(%arg0: i32) -> (i32, i32) {
    %c0_i32 = arith.constant 0 : i32
    %c0_i32_0 = arith.constant 0 : i32
    %c0_i32_1 = arith.constant 0 : i32
    return %c0_i32, %c0_i32_0 : i32, i32
  }
  func.func @transform_3(%arg0: i32) -> (i32, i32) {
    %c0_i32 = arith.constant 0 : i32
    %c0_i32_0 = arith.constant 0 : i32
    %c0_i32_1 = arith.constant 0 : i32
    return %c0_i32, %c0_i32_0 : i32, i32
  }
  func.func @transform_4(%arg0: i32) -> (i32, i32) {
    %c0_i32 = arith.constant 0 : i32
    %c0_i32_0 = arith.constant 0 : i32
    %c0_i32_1 = arith.constant 0 : i32
    return %c0_i32, %c0_i32_0 : i32, i32
  }
  func.func @transform_5(%arg0: i32) -> (i32, i32) {
    %c0_i32 = arith.constant 0 : i32
    %c0_i32_0 = arith.constant 0 : i32
    %c0_i32_1 = arith.constant 0 : i32
    return %c0_i32, %c0_i32_0 : i32, i32
  }
  func.func @transform_6(%arg0: i32) -> (i32, i32) {
    %c0_i32 = arith.constant 0 : i32
    %c0_i32_0 = arith.constant 0 : i32
    %c0_i32_1 = arith.constant 0 : i32
    return %c0_i32, %c0_i32_0 : i32, i32
  }
  func.func @transform_7(%arg0: i32) -> (i32, i32) {
    %c0_i32 = arith.constant 0 : i32
    %c0_i32_0 = arith.constant 0 : i32
    return %arg0, %c0_i32 : i32, i32
  }
}

</mosaic_0001>

<llo_original>
// kernel: tpu_custom_call.1
$region0: #{tpu_custom_call.1}
  #allocation0 [shape = 'u32[]', space=smem, size = 0x4, offset = 0x4, fixed_abs, tag = 'smem constant byte address 0x4 - core index']
  #allocation1 [shape = 'u32[144,128]{1,0:T(1,128)}', space=vmem, size = 0x12000, scoped, tag = 'internal scratch']
  %s0 = inlined_call_operand.vmem [shape: bf16[8,32], index: 0, kind: input, shape index: {}]
  %s1 = inlined_call_operand.vmem [shape: bf16[32,64], index: 1, kind: input, shape index: {}]
  %s2 = inlined_call_operand.vmem [shape: f32[1,64], index: 2, kind: input, shape index: {}]
  %s3 = inlined_call_operand.vmem [shape: bf16[64,48], index: 3, kind: input, shape index: {}]
  %s4 = inlined_call_operand.vmem [shape: f32[1,48], index: 4, kind: input, shape index: {}]
  %s5 = inlined_call_operand.vmem [shape: bf16[48,16], index: 5, kind: input, shape index: {}]
  %s6 = inlined_call_operand.vmem [shape: f32[1,16], index: 6, kind: input, shape index: {}]
  %s7 = inlined_call_operand.hbm [shape: f32[8,16], index: 7, kind: output, shape index: {}]
  %s8 = sld [smem:[#allocation0]]
  $region38: #{tpu_custom_call.1} parent=0
    _
  %s10 = ssub.s32 1, %s8
  %s11 = scalar_select 0, %s10, %s8
  $region1: #{tpu_custom_call.1} parent=0
    #allocation2 [shape = 'u8[4096]{0}', space=vmem, size = 0x1000, scoped, tag = 'output window, operand 0, single buffered']
    #allocation3 [shape = 's32[1]{0}', space=sflag, size = 0x4, scoped, tag = 'scoped memory for tpu_custom_call.1']
    %12 = vsyncpa [#allocation3], 0
    // Predicated region
    $region2: #{tpu_custom_call.1} parent=1 // pred_check
      _
    $region3: #{tpu_custom_call.1} parent=1 // pred_check_branch
      %14 = sbr.rel (0) target = $region5
    $region4: #{tpu_custom_call.1} parent=1 // pred_region
      _
    $region5: #{tpu_custom_call.1} parent=1 // pred_fallthru
      _
    // Predicated region
    $region6: #{tpu_custom_call.1} parent=1 // pred_check
      _
    $region7: #{tpu_custom_call.1} parent=1 // pred_check_branch
      %16 = sbr.rel (0) target = $region9
    $region8: #{tpu_custom_call.1} parent=1 // pred_region
      _
    $region9: #{tpu_custom_call.1} parent=1 // pred_fallthru
      _
    // Predicated region
    $region10: #{tpu_custom_call.1} parent=1 // pred_check
      _
    $region11: #{tpu_custom_call.1} parent=1 // pred_check_branch
      %18 = sbr.rel (0) target = $region13
    $region12: #{tpu_custom_call.1} parent=1 // pred_region
      _
    $region13: #{tpu_custom_call.1} parent=1 // pred_fallthru
      _
    // Predicated region
    $region14: #{tpu_custom_call.1} parent=1 // pred_check
      _
    $region15: #{tpu_custom_call.1} parent=1 // pred_check_branch
      %20 = sbr.rel (0) target = $region17
    $region16: #{tpu_custom_call.1} parent=1 // pred_region
      _
    $region17: #{tpu_custom_call.1} parent=1 // pred_fallthru
      _
    // Predicated region
    $region18: #{tpu_custom_call.1} parent=1 // pred_check
      _
    $region19: #{tpu_custom_call.1} parent=1 // pred_check_branch
      %22 = sbr.rel (0) target = $region21
    $region20: #{tpu_custom_call.1} parent=1 // pred_region
      _
    $region21: #{tpu_custom_call.1} parent=1 // pred_fallthru
      _
    // Predicated region
    $region22: #{tpu_custom_call.1} parent=1 // pred_check
      _
    $region23: #{tpu_custom_call.1} parent=1 // pred_check_branch
      %24 = sbr.rel (0) target = $region25
    $region24: #{tpu_custom_call.1} parent=1 // pred_region
      _
    $region25: #{tpu_custom_call.1} parent=1 // pred_fallthru
      _
    // Predicated region
    $region26: #{tpu_custom_call.1} parent=1 // pred_check
      _
    $region27: #{tpu_custom_call.1} parent=1 // pred_check_branch
      %26 = sbr.rel (0) target = $region29
    $region28: #{tpu_custom_call.1} parent=1 // pred_region
      _
    $region29: #{tpu_custom_call.1} parent=1 // pred_fallthru
      _
    %v28 = vld [vmem:[%s0] sm:$0xf]
    %v29 = vld [vmem:[%s1] sm:$0xf]
    %v30 = vld [vmem:[%s1 + $0x4] sm:$0xf]
    %v31 = vld [vmem:[%s1 + $0x8] sm:$0xf]
    %v32 = vld [vmem:[%s1 + $0xc] sm:$0xf]
    %v33 = vld [vmem:[%s2] sm:$0x1]
    %v35 = vlaneseq
    %v36 = vshrl.u32 %v35, 7
    %v37 = vsub.s32 0, %v36
    %v38 = vrot.slane %v33, %v37
    %v44 = vunpack.c.l.b16 %v29
    %v45 = vunpack.c.l.b16 %v30
    %v46 = vunpack.c.l.b16 %v31
    %v47 = vunpack.c.l.b16 %v32
    %v48 = vpack.c.b16 %v45, %v44
    %v49 = vpack.c.b16 %v47, %v46
    %vm52 = vcmask 261120
    %v54 = vsel %vm52, %v28, 0
    %56 = vmatprep.subr.bf16.mxu0 0
    %57 = vmatpush1.bf16.msra.mxu0 %v48
    %58 = vmatprep.subr.bf16.mxu0 0
    %59 = vmatpush1.bf16.msra.mxu0 %v49
    %60 = vmatprep.subr.bf16.mxu0 0
    %61 = vmatpush1.bf16.msra.mxu0 0
    %62 = vmatprep.subr.bf16.mxu0 0
    %63 = vmatpush1.bf16.msra.mxu0 0
    %64 = vmatprep.subr.bf16.mxu0 0
    %65 = vmatpush1.bf16.msra.mxu0 0
    %66 = vmatprep.subr.bf16.mxu0 0
    %67 = vmatpush1.bf16.msra.mxu0 0
    %68 = vmatprep.subr.bf16.mxu0 0
    %69 = vmatpush1.bf16.msra.mxu0 0
    %70 = vmatprep.subr.bf16.mxu0 0
    %71 = vmatpush1.bf16.msra.mxu0 0
    %72 = vmatprep.subr.bf16.mxu0 0
    %73 = vmatpush1.bf16.msra.mxu0 0
    %74 = vmatprep.subr.bf16.mxu0 0
    %75 = vmatpush1.bf16.msra.mxu0 0
    %76 = vmatprep.subr.bf16.mxu0 0
    %77 = vmatpush1.bf16.msra.mxu0 0
    %78 = vmatprep.subr.bf16.mxu0 0
    %79 = vmatpush1.bf16.msra.mxu0 0
    %80 = vmatprep.subr.bf16.mxu0 0
    %81 = vmatpush1.bf16.msra.mxu0 0
    %82 = vmatprep.subr.bf16.mxu0 0
    %83 = vmatpush1.bf16.msra.mxu0 0
    %84 = vmatprep.subr.bf16.mxu0 0
    %85 = vmatpush1.bf16.msra.mxu0 0
    %86 = vmatprep.subr.bf16.mxu0 0
    %87 = vmatpush1.bf16.msra.mxu0 0
    %88 = vmatprep.mubr.bf16.mxu0 0
    %89 = vmatmul.mubr.bf16.gmra.mrb[0].mxu0 %v54
    %v90 = vpop.f32.mrb[0].mxu0
    %v91 = vadd.f32 %v38, %v90
    %v92 = vpop.f32.mrb[0].mxu0
    %v93 = vpop.f32.mrb[0].mxu0
    %v94 = vpop.f32.mrb[0].mxu0
    %95 = vdwg.mxu0
    %vm96 = vcmp.gt.f32.partialorder %v91, 0.0
    %v97 = vmul.f32 %v91, 0.1
    %v98 = vsel %vm96, %v91, %v97
    %v99 = vpack.c.bf16 %v98, %v98
    %v100 = vld [vmem:[%s3] sm:$0xf]
    %v101 = vld [vmem:[%s3 + $0x4] sm:$0xf]
    %v102 = vld [vmem:[%s3 + $0x8] sm:$0xf]
    %v103 = vld [vmem:[%s3 + $0xc] sm:$0xf]
    %v104 = vld [vmem:[%s3 + $0x10] sm:$0xf]
    %v105 = vld [vmem:[%s3 + $0x14] sm:$0xf]
    %v106 = vld [vmem:[%s3 + $0x18] sm:$0xf]
    %v107 = vld [vmem:[%s3 + $0x1c] sm:$0xf]
    %v108 = vld [vmem:[%s4] sm:$0x1]
    %v110 = vlaneseq
    %v111 = vshrl.u32 %v110, 7
    %v112 = vsub.s32 0, %v111
    %v113 = vrot.slane %v108, %v112
    %v123 = vunpack.c.l.b16 %v100
    %v124 = vunpack.c.l.b16 %v101
    %v125 = vunpack.c.l.b16 %v102
    %v126 = vunpack.c.l.b16 %v103
    %v127 = vunpack.c.l.b16 %v104
    %v128 = vunpack.c.l.b16 %v105
    %v129 = vunpack.c.l.b16 %v106
    %v130 = vunpack.c.l.b16 %v107
    %v131 = vpack.c.b16 %v124, %v123
    %v132 = vpack.c.b16 %v126, %v125
    %v133 = vpack.c.b16 %v128, %v127
    %v134 = vpack.c.b16 %v130, %v129
    %vm139 = vcmask 523264
    %v141 = vsel %vm139, %v99, 0
    %143 = vmatprep.subr.bf16.mxu0 0
    %144 = vmatpush1.bf16.msra.mxu0 %v131
    %145 = vmatprep.subr.bf16.mxu0 0
    %146 = vmatpush1.bf16.msra.mxu0 %v132
    %147 = vmatprep.subr.bf16.mxu0 0
    %148 = vmatpush1.bf16.msra.mxu0 %v133
    %149 = vmatprep.subr.bf16.mxu0 0
    %150 = vmatpush1.bf16.msra.mxu0 %v134
    %151 = vmatprep.subr.bf16.mxu0 0
    %152 = vmatpush1.bf16.msra.mxu0 0
    %153 = vmatprep.subr.bf16.mxu0 0
    %154 = vmatpush1.bf16.msra.mxu0 0
    %155 = vmatprep.subr.bf16.mxu0 0
    %156 = vmatpush1.bf16.msra.mxu0 0
    %157 = vmatprep.subr.bf16.mxu0 0
    %158 = vmatpush1.bf16.msra.mxu0 0
    %159 = vmatprep.subr.bf16.mxu0 0
    %160 = vmatpush1.bf16.msra.mxu0 0
    %161 = vmatprep.subr.bf16.mxu0 0
    %162 = vmatpush1.bf16.msra.mxu0 0
    %163 = vmatprep.subr.bf16.mxu0 0
    %164 = vmatpush1.bf16.msra.mxu0 0
    %165 = vmatprep.subr.bf16.mxu0 0
    %166 = vmatpush1.bf16.msra.mxu0 0
    %167 = vmatprep.subr.bf16.mxu0 0
    %168 = vmatpush1.bf16.msra.mxu0 0
    %169 = vmatprep.subr.bf16.mxu0 0
    %170 = vmatpush1.bf16.msra.mxu0 0
    %171 = vmatprep.subr.bf16.mxu0 0
    %172 = vmatpush1.bf16.msra.mxu0 0
    %173 = vmatprep.subr.bf16.mxu0 0
    %174 = vmatpush1.bf16.msra.mxu0 0
    %175 = vmatprep.mubr.bf16.mxu0 0
    %176 = vmatmul.mubr.bf16.gmra.mrb[0].mxu0 %v141
    %v177 = vpop.f32.mrb[0].mxu0
    %v178 = vadd.f32 %v113, %v177
    %v179 = vpop.f32.mrb[0].mxu0
    %v180 = vpop.f32.mrb[0].mxu0
    %v181 = vpop.f32.mrb[0].mxu0
    %182 = vdwg.mxu0
    %vm183 = vcmp.gt.f32.partialorder %v178, 0.0
    %v184 = vmul.f32 %v178, 0.1
    %v185 = vsel %vm183, %v178, %v184
    %v186 = vpack.c.bf16 %v185, %v185
    %v187 = vld [vmem:[%s5] sm:$0xf]
    %v188 = vld [vmem:[%s5 + $0x4] sm:$0xf]
    %v189 = vld [vmem:[%s5 + $0x8] sm:$0xf]
    %v190 = vld [vmem:[%s5 + $0xc] sm:$0xf]
    %v191 = vld [vmem:[%s5 + $0x10] sm:$0xf]
    %v192 = vld [vmem:[%s5 + $0x14] sm:$0xf]
    %v193 = vld [vmem:[%s6] sm:$0x1]
    %v195 = vlaneseq
    %v196 = vshrl.u32 %v195, 7
    %v197 = vsub.s32 0, %v196
    %v198 = vrot.slane %v193, %v197
    %v206 = vunpack.c.l.b16 %v187
    %v207 = vunpack.c.l.b16 %v188
    %v208 = vunpack.c.l.b16 %v189
    %v209 = vunpack.c.l.b16 %v190
    %v210 = vunpack.c.l.b16 %v191
    %v211 = vunpack.c.l.b16 %v192
    %v212 = vpack.c.b16 %v207, %v206
    %v213 = vpack.c.b16 %v209, %v208
    %v214 = vpack.c.b16 %v211, %v210
    %vm218 = vcmask 392192
    %v220 = vsel %vm218, %v186, 0
    %222 = vmatprep.subr.bf16.mxu0 0
    %223 = vmatpush1.bf16.msra.mxu0 %v212
    %224 = vmatprep.subr.bf16.mxu0 0
    %225 = vmatpush1.bf16.msra.mxu0 %v213
    %226 = vmatprep.subr.bf16.mxu0 0
    %227 = vmatpush1.bf16.msra.mxu0 %v214
    %228 = vmatprep.subr.bf16.mxu0 0
    %229 = vmatpush1.bf16.msra.mxu0 0
    %230 = vmatprep.subr.bf16.mxu0 0
    %231 = vmatpush1.bf16.msra.mxu0 0
    %232 = vmatprep.subr.bf16.mxu0 0
    %233 = vmatpush1.bf16.msra.mxu0 0
    %234 = vmatprep.subr.bf16.mxu0 0
    %235 = vmatpush1.bf16.msra.mxu0 0
    %236 = vmatprep.subr.bf16.mxu0 0
    %237 = vmatpush1.bf16.msra.mxu0 0
    %238 = vmatprep.subr.bf16.mxu0 0
    %239 = vmatpush1.bf16.msra.mxu0 0
    %240 = vmatprep.subr.bf16.mxu0 0
    %241 = vmatpush1.bf16.msra.mxu0 0
    %242 = vmatprep.subr.bf16.mxu0 0
    %243 = vmatpush1.bf16.msra.mxu0 0
    %244 = vmatprep.subr.bf16.mxu0 0
    %245 = vmatpush1.bf16.msra.mxu0 0
    %246 = vmatprep.subr.bf16.mxu0 0
    %247 = vmatpush1.bf16.msra.mxu0 0
    %248 = vmatprep.subr.bf16.mxu0 0
    %249 = vmatpush1.bf16.msra.mxu0 0
    %250 = vmatprep.subr.bf16.mxu0 0
    %251 = vmatpush1.bf16.msra.mxu0 0
    %252 = vmatprep.subr.bf16.mxu0 0
    %253 = vmatpush1.bf16.msra.mxu0 0
    %254 = vmatprep.mubr.bf16.mxu0 0
    %255 = vmatmul.mubr.bf16.gmra.mrb[0].mxu0 %v220
    %v256 = vpop.f32.mrb[0].mxu0
    %v257 = vadd.f32 %v198, %v256
    %v258 = vpop.f32.mrb[0].mxu0
    %v259 = vpop.f32.mrb[0].mxu0
    %v260 = vpop.f32.mrb[0].mxu0
    %261 = vdwg.mxu0
    %vm262 = vcmask 130048
    %v263 = vsel %vm262, %v257, -inf
    %264 = vmax.xlane.f32.xlu0 %v263
    %v265 = vpop.xlane.xlu0 %264
    %v266 = vsub.f32 %v257, %v265
    %v267 = vmul.f32 %v266, 1.442695
    %v268 = vpow.pop %v267
    %v269 = vsel %vm262, %v268, 0.0
    %270 = vadd.xlane.f32.xlu0 %v269
    %v271 = vpop.xlane.xlu0 %270
    %v272 = vrcp.pop %v271
    %v273 = vmul.f32 %v268, %v272
    %274 = vst.msk [vmem:[#allocation2] sm:$0xff] %vm262, %v273
    // Predicated region
    $region30: #{tpu_custom_call.1} parent=1 // pred_check
      _
    $region31: #{tpu_custom_call.1} parent=1 // pred_check_branch
      %276 = sbr.rel (0) target = $region33
    $region32: #{tpu_custom_call.1} parent=1 // pred_region
      %s278 = ssub.s32 128, 128
      %279 = vsyncadd [#allocation3], %s278
      %s281 = sshll.u32 [#allocation2], 4
      %s282 = int_to_ptr.vmem [resolvable:$true] %s281
      %284 = dma.vmem_to_hbm [thread:$0]  %s282, 128, %s7, [#allocation3]
    $region33: #{tpu_custom_call.1} parent=1 // pred_fallthru
      _
    // Predicated region
    $region34: #{tpu_custom_call.1} parent=1 // pred_check
      _
    $region35: #{tpu_custom_call.1} parent=1 // pred_check_branch
      %286 = sbr.rel (0) target = $region37
    $region36: #{tpu_custom_call.1} parent=1 // pred_region
      %287 = dma.done [#allocation3], 128
    $region37: #{tpu_custom_call.1} parent=1 // pred_fallthru
      _
    %288 = vsyncpa [#allocation3], 1

</llo_original>
